<compile_context>
chip_gen: v5e
topology: v5e:2x2
jax: 0.10.0
libtpu: 0.0.40
codegen_flags: <defaults>
</compile_context>

<pallas_src>
import functools
import math

import jax
import jax.numpy as jnp
from jax.experimental import pallas as pl
from jax.experimental.pallas import tpu as pltpu


# ----------------------------- kernel ----------------------------------------

def _mha_kernel(x_ref, w_ref, bias_ref, out_ref, attnw_ref,
                *, nb, tq, tk, dm, nh):
    """Fused multi-head attention.

    x_ref    : (nb*tq + nb*tk, dm)  stacked [query rows ; key/value-source rows]
    w_ref    : (dm, 4*dm)           packed [Wq | Wk | Wv | Wo]   (lane-dense)
    bias_ref : (nb, tk)             additive mask (0 or -1e30)
    out_ref  : (nb*tq, dm)          attention output (pre batch/seq reshape)
    attnw_ref: (nb, nh, tq, tk)     attention weights
    """
    hd = dm // nh
    nq = nb * tq
    scale = 1.0 / math.sqrt(dm)   # module scales by sqrt(input_dim), not head_dim

    x = x_ref[...]
    w = w_ref[...]

    # One wide MXU matmul computes all projections at once (the unused corner
    # blocks — e.g. the q-projection of the key rows — are free at this size).
    proj = jnp.dot(x, w, preferred_element_type=jnp.float32)   # (nq+nk, 4*dm)

    q = proj[:nq, 0:dm].reshape(nb, tq, dm)                    # (B, TQ, D)
    k = proj[nq:, dm:2 * dm].reshape(nb, tk, dm)               # (B, TK, D)
    v = proj[nq:, 2 * dm:3 * dm].reshape(nb, tk, dm)           # (B, TK, D)
    wo = w[:, 3 * dm:]                                         # (D, D)
    bias = bias_ref[...][:, None, :]                           # (B, 1, TK)

    out = jnp.zeros((nq, dm), jnp.float32)
    p_heads = []
    for h in range(nh):                    # static unroll; batch dim handled by einsum
        lo = h * hd
        qh = q[..., lo:lo + hd]            # (B, TQ, HD)
        kh = k[..., lo:lo + hd]            # (B, TK, HD)
        vh = v[..., lo:lo + hd]            # (B, TK, HD)

        s = jnp.einsum("bqd,bkd->bqk", qh, kh,
                       preferred_element_type=jnp.float32) * scale + bias
        m = jnp.max(s, axis=-1, keepdims=True)
        e = jnp.exp(s - m)
        p = e * pl.reciprocal(jnp.sum(e, axis=-1, keepdims=True), approx=True)
        p_heads.append(p)                  # (B, TQ, TK)

        ctx = jnp.einsum("bqk,bkd->bqd", p, vh,
                         preferred_element_type=jnp.float32)   # (B, TQ, HD)
        # out-projection accumulated per head slice of Wo -> no lane concatenate
        out = out + jnp.dot(ctx.reshape(nq, hd), wo[lo:lo + hd, :],
                            preferred_element_type=jnp.float32)

    attnw_ref[...] = jnp.stack(p_heads, axis=1)   # (B, H, TQ, TK) — single store
    out_ref[...] = out                            # (B*TQ, D)     — single store


# ----------------------------- wrapper ----------------------------------------

def multi_head_attention(query, key, attention_mask, params, *,
                         num_heads, encoder_decoder_attention=True):
    """Equivalent of MultiHeadAttention.forward(query, key, attention_mask)."""
    nb, tq, dm = query.shape
    kv_src = key if encoder_decoder_attention else query
    _, tk, _ = kv_src.shape

    # Fold batch into the sublane axis and stack q-rows with k/v-source rows.
    x2d = jnp.concatenate(
        [query.reshape(nb * tq, dm), kv_src.reshape(nb * tk, dm)], axis=0)
    # Pack all four projection weights into one lane-dense (D, 4D) buffer.
    w_all = jnp.concatenate(
        [params["wq"], params["wk"], params["wv"], params["wo"]], axis=1)

    if attention_mask is None:
        bias = jnp.zeros((nb, tk), jnp.float32)
    else:   # True = masked (non-causal padding mask path of the module)
        bias = jnp.where(attention_mask, -1e30, 0.0).astype(jnp.float32)

    kernel = functools.partial(_mha_kernel, nb=nb, tq=tq, tk=tk, dm=dm,
                               nh=num_heads)
    vmem = pl.BlockSpec(memory_space=pltpu.MemorySpace.VMEM)
    out2d, attnw = pl.pallas_call(
        kernel,
        out_shape=(jax.ShapeDtypeStruct((nb * tq, dm), jnp.float32),
                   jax.ShapeDtypeStruct((nb, num_heads, tq, tk), jnp.float32)),
        in_specs=[vmem, vmem, vmem],
        out_specs=(vmem, vmem),
    )(x2d, w_all, bias)

    return out2d.reshape(nb, tq, dm), attnw


# ------------------------- pure-JAX reference ---------------------------------

def reference_mha(query, key, attention_mask, params, *,
                  num_heads, encoder_decoder_attention=True):
    nb, tq, dm = query.shape
    hd = dm // num_heads
    kv_src = key if encoder_decoder_attention else query
    tk = kv_src.shape[1]

    q = query @ params["wq"]
    k = kv_src @ params["wk"]
    v = kv_src @ params["wv"]
    qh = q.reshape(nb, tq, num_heads, hd).transpose(0, 2, 1, 3)
    kh = k.reshape(nb, tk, num_heads, hd).transpose(0, 2, 1, 3)
    vh = v.reshape(nb, tk, num_heads, hd).transpose(0, 2, 1, 3)

    s = jnp.einsum("bhqd,bhkd->bhqk", qh, kh) / math.sqrt(dm)
    if attention_mask is not None:
        s = jnp.where(attention_mask[:, None, None, :], -jnp.inf, s)
    p = jax.nn.softmax(s, axis=-1)
    o = jnp.einsum("bhqk,bhkd->bhqd", p, vh).transpose(0, 2, 1, 3)
    o = o.reshape(nb, tq, dm) @ params["wo"]
    return o, p


# ------------------------------- main ------------------------------------------

if __name__ == "__main__":
    B, TQ, TK, D, H = 2, 8, 8, 32, 4

    root = jax.random.PRNGKey(0)
    k_q, k_k, k_w = jax.random.split(root, 3)
    query = jax.random.normal(k_q, (B, TQ, D), dtype=jnp.float32)
    enc_key = jax.random.normal(k_k, (B, TK, D), dtype=jnp.float32)

    wkeys = jax.random.split(k_w, 4)
    wscale = 1.0 / math.sqrt(D)
    # weights stored as (in_features, out_features) so y = x @ W  (bias=False)
    params = {name: (wscale * jax.random.normal(kk, (D, D))).astype(jnp.float32)
              for name, kk in zip(("wq", "wk", "wv", "wo"), wkeys)}

    # key-padding mask: batch 0 -> nothing masked, batch 1 -> last two keys masked
    key_lens = jnp.array([TK, TK - 2])
    attention_mask = jnp.arange(TK)[None, :] >= key_lens[:, None]   # True = masked

    # --- cross-attention (encoder_decoder_attention=True), with mask ----------
    out, attnw = multi_head_attention(query, enc_key, attention_mask, params,
                                      num_heads=H, encoder_decoder_attention=True)
    out = jax.block_until_ready(out)
    attnw = jax.block_until_ready(attnw)

    ref_out, ref_attnw = reference_mha(query, enc_key, attention_mask, params,
                                       num_heads=H, encoder_decoder_attention=True)
    assert out.shape == (B, TQ, D)
    assert attnw.shape == (B, H, TQ, TK)
    assert jnp.max(jnp.abs(out - ref_out)) < 1e-2
    assert jnp.max(jnp.abs(attnw - ref_attnw)) < 1e-2

    # --- self-attention (encoder_decoder_attention=False), no mask ------------
    out_s, attnw_s = multi_head_attention(query, enc_key, None, params,
                                          num_heads=H,
                                          encoder_decoder_attention=False)
    out_s = jax.block_until_ready(out_s)
    ref_out_s, ref_attnw_s = reference_mha(query, enc_key, None, params,
                                           num_heads=H,
                                           encoder_decoder_attention=False)
    assert jnp.max(jnp.abs(out_s - ref_out_s)) < 1e-2
    assert jnp.max(jnp.abs(attnw_s - ref_attnw_s)) < 1e-2

    print("KERNEL_OK")
</pallas_src>

<mosaic_0001>
module attributes {stable_mosaic.version = 11 : i64} {
  func.func @_mha_kernel(%arg0: memref<32x32xf32, #tpu.memory_space<vmem>>, %arg1: memref<32x128xf32, #tpu.memory_space<vmem>>, %arg2: memref<2x8xf32, #tpu.memory_space<vmem>>, %arg3: memref<16x32xf32, #tpu.memory_space<vmem>>, %arg4: memref<2x4x8x8xf32, #tpu.memory_space<vmem>>) attributes {dimension_semantics = [], scalar_prefetch = 0 : i64, scratch_operands = 0 : i64, tpu.core_type = #tpu.core_type<tc>} {
    %c0 = arith.constant 0 : index
    %c0_0 = arith.constant 0 : index
    %0 = vector.load %arg0[%c0, %c0_0] : memref<32x32xf32, #tpu.memory_space<vmem>>, vector<32x32xf32>
    %c0_1 = arith.constant 0 : index
    %c0_2 = arith.constant 0 : index
    %1 = vector.load %arg1[%c0_1, %c0_2] : memref<32x128xf32, #tpu.memory_space<vmem>>, vector<32x128xf32>
    %cst = arith.constant dense<0.000000e+00> : vector<32x128xf32>
    %2 = tpu.matmul %0, %1, %cst {dimension_numbers = #tpu.dot_dimension_numbers<[1], [0], [0], [1], [0, 0, 1, 1], [], []>} : vector<32x32xf32>, vector<32x128xf32>, vector<32x128xf32> -> vector<32x128xf32>
    %3 = vector.extract_strided_slice %2 {offsets = [0, 0], sizes = [16, 32], strides = [1, 1]} : vector<32x128xf32> to vector<16x32xf32>
    %4 = vector.shape_cast %3 : vector<16x32xf32> to vector<2x8x32xf32>
    %5 = vector.extract_strided_slice %2 {offsets = [16, 32], sizes = [16, 32], strides = [1, 1]} : vector<32x128xf32> to vector<16x32xf32>
    %6 = vector.shape_cast %5 : vector<16x32xf32> to vector<2x8x32xf32>
    %7 = vector.extract_strided_slice %2 {offsets = [16, 64], sizes = [16, 32], strides = [1, 1]} : vector<32x128xf32> to vector<16x32xf32>
    %8 = vector.shape_cast %7 : vector<16x32xf32> to vector<2x8x32xf32>
    %9 = vector.extract_strided_slice %1 {offsets = [0, 96], sizes = [32, 32], strides = [1, 1]} : vector<32x128xf32> to vector<32x32xf32>
    %c0_3 = arith.constant 0 : index
    %c0_4 = arith.constant 0 : index
    %10 = vector.load %arg2[%c0_3, %c0_4] : memref<2x8xf32, #tpu.memory_space<vmem>>, vector<2x8xf32>
    %11 = vector.shape_cast %10 : vector<2x8xf32> to vector<2x1x8xf32>
    %cst_5 = arith.constant 0.000000e+00 : f32
    %12 = vector.broadcast %cst_5 : f32 to vector<16x32xf32>
    %13 = vector.extract_strided_slice %4 {offsets = [0, 0, 0], sizes = [2, 8, 8], strides = [1, 1, 1]} : vector<2x8x32xf32> to vector<2x8x8xf32>
    %14 = vector.extract_strided_slice %6 {offsets = [0, 0, 0], sizes = [2, 8, 8], strides = [1, 1, 1]} : vector<2x8x32xf32> to vector<2x8x8xf32>
    %15 = vector.extract_strided_slice %8 {offsets = [0, 0, 0], sizes = [2, 8, 8], strides = [1, 1, 1]} : vector<2x8x32xf32> to vector<2x8x8xf32>
    "tpu.trace_start"() <{level = 10 : i32, message = "bqd,bkd->bqk"}> : () -> ()
    %cst_6 = arith.constant dense<0.000000e+00> : vector<2x8x8xf32>
    %16 = tpu.matmul %13, %14, %cst_6 {dimension_numbers = #tpu.dot_dimension_numbers<[2], [2], [1], [1], [0, 0, 0, 1, 1, 1], [0], [0]>} : vector<2x8x8xf32>, vector<2x8x8xf32>, vector<2x8x8xf32> -> vector<2x8x8xf32>
    "tpu.trace_stop"() : () -> ()
    %cst_7 = arith.constant 0.176776692 : f32
    %17 = vector.broadcast %cst_7 : f32 to vector<2x8x8xf32>
    %18 = arith.mulf %16, %17 : vector<2x8x8xf32>
    %19 = vector.broadcast %11 : vector<2x1x8xf32> to vector<2x8x8xf32>
    %20 = arith.addf %18, %19 : vector<2x8x8xf32>
    %cst_8 = arith.constant dense<0xFF800000> : vector<2x8xf32>
    %21 = vector.multi_reduction <maximumf>, %20, %cst_8 [2] : vector<2x8x8xf32> to vector<2x8xf32>
    %22 = vector.shape_cast %21 : vector<2x8xf32> to vector<2x8x1xf32>
    %23 = vector.broadcast %22 : vector<2x8x1xf32> to vector<2x8x8xf32>
    %24 = arith.subf %20, %23 : vector<2x8x8xf32>
    %25 = math.exp %24 : vector<2x8x8xf32>
    %cst_9 = arith.constant dense<0.000000e+00> : vector<2x8xf32>
    %26 = vector.multi_reduction <add>, %25, %cst_9 [2] : vector<2x8x8xf32> to vector<2x8xf32>
    %27 = vector.shape_cast %26 : vector<2x8xf32> to vector<2x8x1xf32>
    %28 = tpu.reciprocal %27 {approx = true} : vector<2x8x1xf32> -> vector<2x8x1xf32>
    %29 = vector.broadcast %28 : vector<2x8x1xf32> to vector<2x8x8xf32>
    %30 = arith.mulf %25, %29 : vector<2x8x8xf32>
    "tpu.trace_start"() <{level = 10 : i32, message = "bqk,bkd->bqd"}> : () -> ()
    %cst_10 = arith.constant dense<0.000000e+00> : vector<2x8x8xf32>
    %31 = tpu.matmul %30, %15, %cst_10 {dimension_numbers = #tpu.dot_dimension_numbers<[2], [1], [1], [2], [0, 0, 0, 1, 1, 2], [0], [0]>} : vector<2x8x8xf32>, vector<2x8x8xf32>, vector<2x8x8xf32> -> vector<2x8x8xf32>
    "tpu.trace_stop"() : () -> ()
    %32 = vector.shape_cast %31 : vector<2x8x8xf32> to vector<16x8xf32>
    %33 = vector.extract_strided_slice %9 {offsets = [0, 0], sizes = [8, 32], strides = [1, 1]} : vector<32x32xf32> to vector<8x32xf32>
    %cst_11 = arith.constant dense<0.000000e+00> : vector<16x32xf32>
    %34 = tpu.matmul %32, %33, %cst_11 {dimension_numbers = #tpu.dot_dimension_numbers<[1], [0], [0], [1], [0, 0, 1, 1], [], []>} : vector<16x8xf32>, vector<8x32xf32>, vector<16x32xf32> -> vector<16x32xf32>
    %35 = arith.addf %12, %34 : vector<16x32xf32>
    %36 = vector.extract_strided_slice %4 {offsets = [0, 0, 8], sizes = [2, 8, 8], strides = [1, 1, 1]} : vector<2x8x32xf32> to vector<2x8x8xf32>
    %37 = vector.extract_strided_slice %6 {offsets = [0, 0, 8], sizes = [2, 8, 8], strides = [1, 1, 1]} : vector<2x8x32xf32> to vector<2x8x8xf32>
    %38 = vector.extract_strided_slice %8 {offsets = [0, 0, 8], sizes = [2, 8, 8], strides = [1, 1, 1]} : vector<2x8x32xf32> to vector<2x8x8xf32>
    "tpu.trace_start"() <{level = 10 : i32, message = "bqd,bkd->bqk"}> : () -> ()
    %cst_12 = arith.constant dense<0.000000e+00> : vector<2x8x8xf32>
    %39 = tpu.matmul %36, %37, %cst_12 {dimension_numbers = #tpu.dot_dimension_numbers<[2], [2], [1], [1], [0, 0, 0, 1, 1, 1], [0], [0]>} : vector<2x8x8xf32>, vector<2x8x8xf32>, vector<2x8x8xf32> -> vector<2x8x8xf32>
    "tpu.trace_stop"() : () -> ()
    %cst_13 = arith.constant 0.176776692 : f32
    %40 = vector.broadcast %cst_13 : f32 to vector<2x8x8xf32>
    %41 = arith.mulf %39, %40 : vector<2x8x8xf32>
    %42 = vector.broadcast %11 : vector<2x1x8xf32> to vector<2x8x8xf32>
    %43 = arith.addf %41, %42 : vector<2x8x8xf32>
    %cst_14 = arith.constant dense<0xFF800000> : vector<2x8xf32>
    %44 = vector.multi_reduction <maximumf>, %43, %cst_14 [2] : vector<2x8x8xf32> to vector<2x8xf32>
    %45 = vector.shape_cast %44 : vector<2x8xf32> to vector<2x8x1xf32>
    %46 = vector.broadcast %45 : vector<2x8x1xf32> to vector<2x8x8xf32>
    %47 = arith.subf %43, %46 : vector<2x8x8xf32>
    %48 = math.exp %47 : vector<2x8x8xf32>
    %cst_15 = arith.constant dense<0.000000e+00> : vector<2x8xf32>
    %49 = vector.multi_reduction <add>, %48, %cst_15 [2] : vector<2x8x8xf32> to vector<2x8xf32>
    %50 = vector.shape_cast %49 : vector<2x8xf32> to vector<2x8x1xf32>
    %51 = tpu.reciprocal %50 {approx = true} : vector<2x8x1xf32> -> vector<2x8x1xf32>
    %52 = vector.broadcast %51 : vector<2x8x1xf32> to vector<2x8x8xf32>
    %53 = arith.mulf %48, %52 : vector<2x8x8xf32>
    "tpu.trace_start"() <{level = 10 : i32, message = "bqk,bkd->bqd"}> : () -> ()
    %cst_16 = arith.constant dense<0.000000e+00> : vector<2x8x8xf32>
    %54 = tpu.matmul %53, %38, %cst_16 {dimension_numbers = #tpu.dot_dimension_numbers<[2], [1], [1], [2], [0, 0, 0, 1, 1, 2], [0], [0]>} : vector<2x8x8xf32>, vector<2x8x8xf32>, vector<2x8x8xf32> -> vector<2x8x8xf32>
    "tpu.trace_stop"() : () -> ()
    %55 = vector.shape_cast %54 : vector<2x8x8xf32> to vector<16x8xf32>
    %56 = vector.extract_strided_slice %9 {offsets = [8, 0], sizes = [8, 32], strides = [1, 1]} : vector<32x32xf32> to vector<8x32xf32>
    %cst_17 = arith.constant dense<0.000000e+00> : vector<16x32xf32>
    %57 = tpu.matmul %55, %56, %cst_17 {dimension_numbers = #tpu.dot_dimension_numbers<[1], [0], [0], [1], [0, 0, 1, 1], [], []>} : vector<16x8xf32>, vector<8x32xf32>, vector<16x32xf32> -> vector<16x32xf32>
    %58 = arith.addf %35, %57 : vector<16x32xf32>
    %59 = vector.extract_strided_slice %4 {offsets = [0, 0, 16], sizes = [2, 8, 8], strides = [1, 1, 1]} : vector<2x8x32xf32> to vector<2x8x8xf32>
    %60 = vector.extract_strided_slice %6 {offsets = [0, 0, 16], sizes = [2, 8, 8], strides = [1, 1, 1]} : vector<2x8x32xf32> to vector<2x8x8xf32>
    %61 = vector.extract_strided_slice %8 {offsets = [0, 0, 16], sizes = [2, 8, 8], strides = [1, 1, 1]} : vector<2x8x32xf32> to vector<2x8x8xf32>
    "tpu.trace_start"() <{level = 10 : i32, message = "bqd,bkd->bqk"}> : () -> ()
    %cst_18 = arith.constant dense<0.000000e+00> : vector<2x8x8xf32>
    %62 = tpu.matmul %59, %60, %cst_18 {dimension_numbers = #tpu.dot_dimension_numbers<[2], [2], [1], [1], [0, 0, 0, 1, 1, 1], [0], [0]>} : vector<2x8x8xf32>, vector<2x8x8xf32>, vector<2x8x8xf32> -> vector<2x8x8xf32>
    "tpu.trace_stop"() : () -> ()
    %cst_19 = arith.constant 0.176776692 : f32
    %63 = vector.broadcast %cst_19 : f32 to vector<2x8x8xf32>
    %64 = arith.mulf %62, %63 : vector<2x8x8xf32>
    %65 = vector.broadcast %11 : vector<2x1x8xf32> to vector<2x8x8xf32>
    %66 = arith.addf %64, %65 : vector<2x8x8xf32>
    %cst_20 = arith.constant dense<0xFF800000> : vector<2x8xf32>
    %67 = vector.multi_reduction <maximumf>, %66, %cst_20 [2] : vector<2x8x8xf32> to vector<2x8xf32>
    %68 = vector.shape_cast %67 : vector<2x8xf32> to vector<2x8x1xf32>
    %69 = vector.broadcast %68 : vector<2x8x1xf32> to vector<2x8x8xf32>
    %70 = arith.subf %66, %69 : vector<2x8x8xf32>
    %71 = math.exp %70 : vector<2x8x8xf32>
    %cst_21 = arith.constant dense<0.000000e+00> : vector<2x8xf32>
    %72 = vector.multi_reduction <add>, %71, %cst_21 [2] : vector<2x8x8xf32> to vector<2x8xf32>
    %73 = vector.shape_cast %72 : vector<2x8xf32> to vector<2x8x1xf32>
    %74 = tpu.reciprocal %73 {approx = true} : vector<2x8x1xf32> -> vector<2x8x1xf32>
    %75 = vector.broadcast %74 : vector<2x8x1xf32> to vector<2x8x8xf32>
    %76 = arith.mulf %71, %75 : vector<2x8x8xf32>
    "tpu.trace_start"() <{level = 10 : i32, message = "bqk,bkd->bqd"}> : () -> ()
    %cst_22 = arith.constant dense<0.000000e+00> : vector<2x8x8xf32>
    %77 = tpu.matmul %76, %61, %cst_22 {dimension_numbers = #tpu.dot_dimension_numbers<[2], [1], [1], [2], [0, 0, 0, 1, 1, 2], [0], [0]>} : vector<2x8x8xf32>, vector<2x8x8xf32>, vector<2x8x8xf32> -> vector<2x8x8xf32>
    "tpu.trace_stop"() : () -> ()
    %78 = vector.shape_cast %77 : vector<2x8x8xf32> to vector<16x8xf32>
    %79 = vector.extract_strided_slice %9 {offsets = [16, 0], sizes = [8, 32], strides = [1, 1]} : vector<32x32xf32> to vector<8x32xf32>
    %cst_23 = arith.constant dense<0.000000e+00> : vector<16x32xf32>
    %80 = tpu.matmul %78, %79, %cst_23 {dimension_numbers = #tpu.dot_dimension_numbers<[1], [0], [0], [1], [0, 0, 1, 1], [], []>} : vector<16x8xf32>, vector<8x32xf32>, vector<16x32xf32> -> vector<16x32xf32>
    %81 = arith.addf %58, %80 : vector<16x32xf32>
    %82 = vector.extract_strided_slice %4 {offsets = [0, 0, 24], sizes = [2, 8, 8], strides = [1, 1, 1]} : vector<2x8x32xf32> to vector<2x8x8xf32>
    %83 = vector.extract_strided_slice %6 {offsets = [0, 0, 24], sizes = [2, 8, 8], strides = [1, 1, 1]} : vector<2x8x32xf32> to vector<2x8x8xf32>
    %84 = vector.extract_strided_slice %8 {offsets = [0, 0, 24], sizes = [2, 8, 8], strides = [1, 1, 1]} : vector<2x8x32xf32> to vector<2x8x8xf32>
    "tpu.trace_start"() <{level = 10 : i32, message = "bqd,bkd->bqk"}> : () -> ()
    %cst_24 = arith.constant dense<0.000000e+00> : vector<2x8x8xf32>
    %85 = tpu.matmul %82, %83, %cst_24 {dimension_numbers = #tpu.dot_dimension_numbers<[2], [2], [1], [1], [0, 0, 0, 1, 1, 1], [0], [0]>} : vector<2x8x8xf32>, vector<2x8x8xf32>, vector<2x8x8xf32> -> vector<2x8x8xf32>
    "tpu.trace_stop"() : () -> ()
    %cst_25 = arith.constant 0.176776692 : f32
    %86 = vector.broadcast %cst_25 : f32 to vector<2x8x8xf32>
    %87 = arith.mulf %85, %86 : vector<2x8x8xf32>
    %88 = vector.broadcast %11 : vector<2x1x8xf32> to vector<2x8x8xf32>
    %89 = arith.addf %87, %88 : vector<2x8x8xf32>
    %cst_26 = arith.constant dense<0xFF800000> : vector<2x8xf32>
    %90 = vector.multi_reduction <maximumf>, %89, %cst_26 [2] : vector<2x8x8xf32> to vector<2x8xf32>
    %91 = vector.shape_cast %90 : vector<2x8xf32> to vector<2x8x1xf32>
    %92 = vector.broadcast %91 : vector<2x8x1xf32> to vector<2x8x8xf32>
    %93 = arith.subf %89, %92 : vector<2x8x8xf32>
    %94 = math.exp %93 : vector<2x8x8xf32>
    %cst_27 = arith.constant dense<0.000000e+00> : vector<2x8xf32>
    %95 = vector.multi_reduction <add>, %94, %cst_27 [2] : vector<2x8x8xf32> to vector<2x8xf32>
    %96 = vector.shape_cast %95 : vector<2x8xf32> to vector<2x8x1xf32>
    %97 = tpu.reciprocal %96 {approx = true} : vector<2x8x1xf32> -> vector<2x8x1xf32>
    %98 = vector.broadcast %97 : vector<2x8x1xf32> to vector<2x8x8xf32>
    %99 = arith.mulf %94, %98 : vector<2x8x8xf32>
    "tpu.trace_start"() <{level = 10 : i32, message = "bqk,bkd->bqd"}> : () -> ()
    %cst_28 = arith.constant dense<0.000000e+00> : vector<2x8x8xf32>
    %100 = tpu.matmul %99, %84, %cst_28 {dimension_numbers = #tpu.dot_dimension_numbers<[2], [1], [1], [2], [0, 0, 0, 1, 1, 2], [0], [0]>} : vector<2x8x8xf32>, vector<2x8x8xf32>, vector<2x8x8xf32> -> vector<2x8x8xf32>
    "tpu.trace_stop"() : () -> ()
    %101 = vector.shape_cast %100 : vector<2x8x8xf32> to vector<16x8xf32>
    %102 = vector.extract_strided_slice %9 {offsets = [24, 0], sizes = [8, 32], strides = [1, 1]} : vector<32x32xf32> to vector<8x32xf32>
    %cst_29 = arith.constant dense<0.000000e+00> : vector<16x32xf32>
    %103 = tpu.matmul %101, %102, %cst_29 {dimension_numbers = #tpu.dot_dimension_numbers<[1], [0], [0], [1], [0, 0, 1, 1], [], []>} : vector<16x8xf32>, vector<8x32xf32>, vector<16x32xf32> -> vector<16x32xf32>
    %104 = arith.addf %81, %103 : vector<16x32xf32>
    %105 = vector.shape_cast %30 : vector<2x8x8xf32> to vector<2x1x8x8xf32>
    %106 = vector.shape_cast %53 : vector<2x8x8xf32> to vector<2x1x8x8xf32>
    %107 = vector.shape_cast %76 : vector<2x8x8xf32> to vector<2x1x8x8xf32>
    %108 = vector.shape_cast %99 : vector<2x8x8xf32> to vector<2x1x8x8xf32>
    %109 = tpu.concatenate %105, %106, %107, %108 in 1 : vector<2x1x8x8xf32>, vector<2x1x8x8xf32>, vector<2x1x8x8xf32>, vector<2x1x8x8xf32> -> vector<2x4x8x8xf32>
    %c0_30 = arith.constant 0 : index
    %c0_31 = arith.constant 0 : index
    %c0_32 = arith.constant 0 : index
    %c0_33 = arith.constant 0 : index
    %110 = vector.load %arg4[%c0_30, %c0_31, %c0_32, %c0_33] : memref<2x4x8x8xf32, #tpu.memory_space<vmem>>, vector<2x4x8x8xf32>
    tpu.vector_store %arg4[%c0_30, %c0_31, %c0_32, %c0_33], %109 {strides = array<i32>} : memref<2x4x8x8xf32, #tpu.memory_space<vmem>>, vector<2x4x8x8xf32>,
    %c0_34 = arith.constant 0 : index
    %c0_35 = arith.constant 0 : index
    %111 = vector.load %arg3[%c0_34, %c0_35] : memref<16x32xf32, #tpu.memory_space<vmem>>, vector<16x32xf32>
    tpu.vector_store %arg3[%c0_34, %c0_35], %104 {strides = array<i32>} : memref<16x32xf32, #tpu.memory_space<vmem>>, vector<16x32xf32>,
    return
  }
}

</mosaic_0001>

<llo_original>
// kernel: tpu_custom_call.1
$region0: #{tpu_custom_call.1}
  #allocation0 [shape = 'u32[]', space=smem, size = 0x4, offset = 0x4, fixed_abs, tag = 'smem constant byte address 0x4 - core index']
  #allocation1 [shape = 'u32[72,128]{1,0:T(1,128)}', space=vmem, size = 0x9000, scoped, tag = 'internal scratch']
  %s0 = inlined_call_operand.hbm [shape: f32[32,32], index: 0, kind: input, shape index: {}]
  %s1 = inlined_call_operand.hbm [shape: f32[32,128], index: 1, kind: input, shape index: {}]
  %s2 = inlined_call_operand.hbm [shape: f32[2,8], index: 2, kind: input, shape index: {}]
  %s3 = inlined_call_operand.hbm [shape: f32[16,32], index: 3, kind: output, shape index: {0}]
  %s4 = inlined_call_operand.hbm [shape: f32[2,4,8,8], index: 4, kind: output, shape index: {1}]
  %5 = xla_tuple %s3, %s4
  %s6 = sld [smem:[#allocation0]]
  $region42: #{tpu_custom_call.1} parent=0
    _
  %s8 = ssub.s32 1, %s6
  %s9 = scalar_select 0, %s8, %s6
  $region1: #{tpu_custom_call.1} parent=0
    #allocation2 [shape = 'u8[16384]{0}', space=vmem, size = 0x4000, scoped, tag = 'input window, operand 0, single buffered']
    #allocation3 [shape = 's32[1]{0}', space=sflag, size = 0x4, scoped, tag = 'scoped memory for tpu_custom_call.1']
    #allocation4 [shape = 's32[1]{0}', space=sflag, size = 0x4, scoped, tag = 'scoped memory for tpu_custom_call.1']
    #allocation5 [shape = 'u8[16384]{0}', space=vmem, size = 0x4000, scoped, tag = 'input window, operand 1, single buffered']
    #allocation6 [shape = 's32[1]{0}', space=sflag, size = 0x4, scoped, tag = 'scoped memory for tpu_custom_call.1']
    #allocation7 [shape = 'u8[1024]{0}', space=vmem, size = 0x400, scoped, tag = 'input window, operand 2, single buffered']
    #allocation8 [shape = 'u8[8192]{0}', space=vmem, size = 0x2000, scoped, tag = 'output window, operand 0, single buffered']
    #allocation9 [shape = 'u8[32768]{0}', space=vmem, size = 0x8000, scoped, tag = 'output window, operand 1, single buffered']
    #allocation10 [shape = 's32[1]{0}', space=sflag, size = 0x4, scoped, tag = 'scoped memory for tpu_custom_call.1']
    %10 = vsyncpa [#allocation3], 0
    %11 = vsyncpa [#allocation6], 0
    %12 = vsyncpa [#allocation4], 0
    %13 = vsyncpa [#allocation10], 0
    // Predicated region
    $region2: #{tpu_custom_call.1} parent=1 // pred_check
      _
    $region3: #{tpu_custom_call.1} parent=1 // pred_check_branch
      %15 = sbr.rel (0) target = $region5
    $region4: #{tpu_custom_call.1} parent=1 // pred_region
      %17 = vsyncadd [#allocation3], 0
      %s18 = sshll.u32 %s0, 4
      %s19 = int_to_ptr.hbm [resolvable:$true] %s18
      %s20 = sshll.u32 [#allocation2], 4
      %s21 = int_to_ptr.vmem [resolvable:$true] %s20
      %26 = dma.hbm_to_vmem [thread:$0]  %s19, 512, %s21, [#allocation3], 128, 128, 8
    $region5: #{tpu_custom_call.1} parent=1 // pred_fallthru
      _
    // Predicated region
    $region6: #{tpu_custom_call.1} parent=1 // pred_check
      _
    $region7: #{tpu_custom_call.1} parent=1 // pred_check_branch
      %28 = sbr.rel (0) target = $region9
    $region8: #{tpu_custom_call.1} parent=1 // pred_region
      %30 = vsyncadd [#allocation6], 0
      %s31 = sshll.u32 %s1, 4
      %s32 = int_to_ptr.hbm [resolvable:$true] %s31
      %s33 = sshll.u32 [#allocation5], 4
      %s34 = int_to_ptr.vmem [resolvable:$true] %s33
      %39 = dma.hbm_to_vmem [thread:$0]  %s32, 512, %s34, [#allocation6], 128, 128, 8
    $region9: #{tpu_custom_call.1} parent=1 // pred_fallthru
      _
    // Predicated region
    $region10: #{tpu_custom_call.1} parent=1 // pred_check
      _
    $region11: #{tpu_custom_call.1} parent=1 // pred_check_branch
      %41 = sbr.rel (0) target = $region13
    $region12: #{tpu_custom_call.1} parent=1 // pred_region
      %43 = vsyncadd [#allocation6], 0
      %s45 = sshll.u32 %s2, 4
      %s46 = int_to_ptr.hbm [resolvable:$true] %s45
      %s47 = sshll.u32 [#allocation7], 4
      %s48 = int_to_ptr.vmem [resolvable:$true] %s47
      %50 = dma.hbm_to_vmem [thread:$0]  %s46, 32, %s48, [#allocation6]
    $region13: #{tpu_custom_call.1} parent=1 // pred_fallthru
      _
    // Predicated region
    $region14: #{tpu_custom_call.1} parent=1 // pred_check
      _
    $region15: #{tpu_custom_call.1} parent=1 // pred_check_branch
      %52 = sbr.rel (0) target = $region17
    $region16: #{tpu_custom_call.1} parent=1 // pred_region
      %54 = dma.done [#allocation3], 512
    $region17: #{tpu_custom_call.1} parent=1 // pred_fallthru
      _
    // Predicated region
    $region18: #{tpu_custom_call.1} parent=1 // pred_check
      _
    $region19: #{tpu_custom_call.1} parent=1 // pred_check_branch
      %56 = sbr.rel (0) target = $region21
    $region20: #{tpu_custom_call.1} parent=1 // pred_region
      %58 = dma.done [#allocation6], 512
    $region21: #{tpu_custom_call.1} parent=1 // pred_fallthru
      _
    // Predicated region
    $region22: #{tpu_custom_call.1} parent=1 // pred_check
      _
    $region23: #{tpu_custom_call.1} parent=1 // pred_check_branch
      %60 = sbr.rel (0) target = $region25
    $region24: #{tpu_custom_call.1} parent=1 // pred_region
      %62 = dma.done [#allocation6], 32
    $region25: #{tpu_custom_call.1} parent=1 // pred_fallthru
      _
    %v63 = vld [vmem:[#allocation2] sm:$0xff]
    %v64 = vld [vmem:[#allocation2 + $0x8] sm:$0xff]
    %v65 = vld [vmem:[#allocation2 + $0x10] sm:$0xff]
    %v66 = vld [vmem:[#allocation2 + $0x18] sm:$0xff]
    %v67 = vld [vmem:[#allocation5] sm:$0xff]
    %v68 = vld [vmem:[#allocation5 + $0x8] sm:$0xff]
    %v69 = vld [vmem:[#allocation5 + $0x10] sm:$0xff]
    %v70 = vld [vmem:[#allocation5 + $0x18] sm:$0xff]
    %vm71 = vcmask 261120
    %v73 = vsel %vm71, %v63, 0
    %v76 = vsel %vm71, %v64, 0
    %v79 = vsel %vm71, %v65, 0
    %v82 = vsel %vm71, %v66, 0
    %84 = vmatpush.msra.mxu0 0.0
    %85 = vmatpush.msra.mxu0 0.0
    %86 = vmatpush.msra.mxu0 0.0
    %87 = vmatpush.msra.mxu0 0.0
    %88 = vmatpush.msra.mxu0 0.0
    %89 = vmatpush.msra.mxu0 0.0
    %90 = vmatpush.msra.mxu0 0.0
    %91 = vmatpush.msra.mxu0 0.0
    %92 = vmatpush.msra.mxu0 0.0
    %93 = vmatpush.msra.mxu0 0.0
    %94 = vmatpush.msra.mxu0 0.0
    %95 = vmatpush.msra.mxu0 0.0
    %96 = vmatpush.msra.mxu0 %v70
    %97 = vmatpush.msra.mxu0 %v69
    %98 = vmatpush.msra.mxu0 %v68
    %99 = vmatpush.msra.mxu0 %v67
    %100 = vmatmul.f32.gmra.mxu0 %v73
    %v101 = vpop.f32.mrf.mxu0
    %v102 = vadd.f32 0.0, %v101
    %103 = vmatmul.f32.gmra.mxu0 %v76
    %v104 = vpop.f32.mrf.mxu0
    %v105 = vadd.f32 0.0, %v104
    %106 = vmatmul.f32.gmra.mxu0 %v79
    %v107 = vpop.f32.mrf.mxu0
    %v108 = vadd.f32 0.0, %v107
    %109 = vmatmul.f32.gmra.mxu0 %v82
    %v110 = vpop.f32.mrf.mxu0
    %v111 = vadd.f32 0.0, %v110
    %112 = vdwg.mxu0
    %v113 = vld [vmem:[#allocation7] sm:$0x3]
    %v115 = vrot.slane %v113, 1
    %117 = vrot.lane.b32.xlu0 %v108, 96
    %v118 = vpop.permute.xlu0 %117
    %vm119 = vcmask 64512
    %v121 = vsel %vm119, %v102, 0
    %v123 = vsel %vm119, %v118, 0
    %125 = vmatpush.xpose.msra.mxu0 0.0
    %126 = vmatpush.xpose.msra.mxu0 0.0
    %127 = vmatpush.xpose.msra.mxu0 0.0
    %128 = vmatpush.xpose.msra.mxu0 0.0
    %129 = vmatpush.xpose.msra.mxu0 0.0
    %130 = vmatpush.xpose.msra.mxu0 0.0
    %131 = vmatpush.xpose.msra.mxu0 0.0
    %132 = vmatpush.xpose.msra.mxu0 0.0
    %133 = vmatpush.xpose.msra.mxu0 0.0
    %134 = vmatpush.xpose.msra.mxu0 0.0
    %135 = vmatpush.xpose.msra.mxu0 0.0
    %136 = vmatpush.xpose.msra.mxu0 0.0
    %137 = vmatpush.xpose.msra.mxu0 0.0
    %138 = vmatpush.xpose.msra.mxu0 0.0
    %139 = vmatpush.xpose.msra.mxu0 0.0
    %140 = vmatpush.xpose.msra.mxu0 %v123
    %141 = vmatmul.f32.gmra.mxu0 %v121
    %v142 = vpop.f32.mrf.mxu0
    %v143 = vadd.f32 0.0, %v142
    %144 = vdwg.mxu0
    %146 = vrot.lane.b32.xlu0 %v111, 96
    %v147 = vpop.permute.xlu0 %146
    %v149 = vsel %vm119, %v105, 0
    %v151 = vsel %vm119, %v147, 0
    %153 = vmatpush.xpose.msra.mxu0 0.0
    %154 = vmatpush.xpose.msra.mxu0 0.0
    %155 = vmatpush.xpose.msra.mxu0 0.0
    %156 = vmatpush.xpose.msra.mxu0 0.0
    %157 = vmatpush.xpose.msra.mxu0 0.0
    %158 = vmatpush.xpose.msra.mxu0 0.0
    %159 = vmatpush.xpose.msra.mxu0 0.0
    %160 = vmatpush.xpose.msra.mxu0 0.0
    %161 = vmatpush.xpose.msra.mxu0 0.0
    %162 = vmatpush.xpose.msra.mxu0 0.0
    %163 = vmatpush.xpose.msra.mxu0 0.0
    %164 = vmatpush.xpose.msra.mxu0 0.0
    %165 = vmatpush.xpose.msra.mxu0 0.0
    %166 = vmatpush.xpose.msra.mxu0 0.0
    %167 = vmatpush.xpose.msra.mxu0 0.0
    %168 = vmatpush.xpose.msra.mxu0 %v151
    %169 = vmatmul.f32.gmra.mxu0 %v149
    %v170 = vpop.f32.mrf.mxu0
    %v171 = vadd.f32 0.0, %v170
    %172 = vdwg.mxu0
    %v173 = vmul.f32 %v143, 0.17677669
    %v174 = vmul.f32 %v171, 0.17677669
    %v175 = vperm.slane %v113, 0
    %v176 = vperm.slane %v115, 0
    %v179 = vadd.f32 %v173, %v175
    %v180 = vadd.f32 %v174, %v176
    %v181 = vsel %vm119, %v179, -inf
    %182 = vmax.xlane.f32.xlu0 %v181
    %v183 = vpop.xlane.xlu0 %182
    %v184 = vsel %vm119, %v180, -inf
    %185 = vmax.xlane.f32.xlu0 %v184
    %v186 = vpop.xlane.xlu0 %185
    %v187 = vsub.f32 %v179, %v183
    %v188 = vsub.f32 %v180, %v186
    %v189 = vmul.f32 %v187, 1.442695
    %v190 = vpow.pop %v189
    %v191 = vmul.f32 %v188, 1.442695
    %v192 = vpow.pop %v191
    %v193 = vsel %vm119, %v190, 0.0
    %194 = vadd.xlane.f32.xlu0 %v193
    %v195 = vpop.xlane.xlu0 %194
    %v196 = vsel %vm119, %v192, 0.0
    %197 = vadd.xlane.f32.xlu0 %v196
    %v198 = vpop.xlane.xlu0 %197
    %v199 = vrcp.pop %v195
    %v200 = vrcp.pop %v198
    %v201 = vmul.f32 %v190, %v199
    %v202 = vmul.f32 %v192, %v200
    %203 = vrot.lane.b32.xlu0 %v108, 64
    %v204 = vpop.permute.xlu0 %203
    %v207 = vsel %vm119, %v201, 0
    %209 = vmatpush.msra.mxu0 0.0
    %210 = vmatpush.msra.mxu0 0.0
    %211 = vmatpush.msra.mxu0 0.0
    %212 = vmatpush.msra.mxu0 0.0
    %213 = vmatpush.msra.mxu0 0.0
    %214 = vmatpush.msra.mxu0 0.0
    %215 = vmatpush.msra.mxu0 0.0
    %216 = vmatpush.msra.mxu0 0.0
    %217 = vmatpush.msra.mxu0 0.0
    %218 = vmatpush.msra.mxu0 0.0
    %219 = vmatpush.msra.mxu0 0.0
    %220 = vmatpush.msra.mxu0 0.0
    %221 = vmatpush.msra.mxu0 0.0
    %222 = vmatpush.msra.mxu0 0.0
    %223 = vmatpush.msra.mxu0 0.0
    %224 = vmatpush.msra.mxu0 %v204
    %225 = vmatmul.f32.gmra.mxu0 %v207
    %v226 = vpop.f32.mrf.mxu0
    %v227 = vadd.f32 0.0, %v226
    %228 = vdwg.mxu0
    %229 = vrot.lane.b32.xlu0 %v111, 64
    %v230 = vpop.permute.xlu0 %229
    %v233 = vsel %vm119, %v202, 0
    %235 = vmatpush.msra.mxu0 0.0
    %236 = vmatpush.msra.mxu0 0.0
    %237 = vmatpush.msra.mxu0 0.0
    %238 = vmatpush.msra.mxu0 0.0
    %239 = vmatpush.msra.mxu0 0.0
    %240 = vmatpush.msra.mxu0 0.0
    %241 = vmatpush.msra.mxu0 0.0
    %242 = vmatpush.msra.mxu0 0.0
    %243 = vmatpush.msra.mxu0 0.0
    %244 = vmatpush.msra.mxu0 0.0
    %245 = vmatpush.msra.mxu0 0.0
    %246 = vmatpush.msra.mxu0 0.0
    %247 = vmatpush.msra.mxu0 0.0
    %248 = vmatpush.msra.mxu0 0.0
    %249 = vmatpush.msra.mxu0 0.0
    %250 = vmatpush.msra.mxu0 %v230
    %251 = vmatmul.f32.gmra.mxu0 %v233
    %v252 = vpop.f32.mrf.mxu0
    %v253 = vadd.f32 0.0, %v252
    %254 = vdwg.mxu0
    %255 = vrot.lane.b32.xlu0 %v102, 120
    %v256 = vpop.permute.xlu0 %255
    %257 = vrot.lane.b32.xlu0 %v108, 88
    %v258 = vpop.permute.xlu0 %257
    %v259 = vsel %vm119, %v256, 0
    %v261 = vsel %vm119, %v258, 0
    %263 = vmatpush.xpose.msra.mxu0 0.0
    %264 = vmatpush.xpose.msra.mxu0 0.0
    %265 = vmatpush.xpose.msra.mxu0 0.0
    %266 = vmatpush.xpose.msra.mxu0 0.0
    %267 = vmatpush.xpose.msra.mxu0 0.0
    %268 = vmatpush.xpose.msra.mxu0 0.0
    %269 = vmatpush.xpose.msra.mxu0 0.0
    %270 = vmatpush.xpose.msra.mxu0 0.0
    %271 = vmatpush.xpose.msra.mxu0 0.0
    %272 = vmatpush.xpose.msra.mxu0 0.0
    %273 = vmatpush.xpose.msra.mxu0 0.0
    %274 = vmatpush.xpose.msra.mxu0 0.0
    %275 = vmatpush.xpose.msra.mxu0 0.0
    %276 = vmatpush.xpose.msra.mxu0 0.0
    %277 = vmatpush.xpose.msra.mxu0 0.0
    %278 = vmatpush.xpose.msra.mxu0 %v261
    %279 = vmatmul.f32.gmra.mxu0 %v259
    %v280 = vpop.f32.mrf.mxu0
    %v281 = vadd.f32 0.0, %v280
    %282 = vdwg.mxu0
    %283 = vrot.lane.b32.xlu0 %v105, 120
    %v284 = vpop.permute.xlu0 %283
    %285 = vrot.lane.b32.xlu0 %v111, 88
    %v286 = vpop.permute.xlu0 %285
    %v287 = vsel %vm119, %v284, 0
    %v289 = vsel %vm119, %v286, 0
    %291 = vmatpush.xpose.msra.mxu0 0.0
    %292 = vmatpush.xpose.msra.mxu0 0.0
    %293 = vmatpush.xpose.msra.mxu0 0.0
    %294 = vmatpush.xpose.msra.mxu0 0.0
    %295 = vmatpush.xpose.msra.mxu0 0.0
    %296 = vmatpush.xpose.msra.mxu0 0.0
    %297 = vmatpush.xpose.msra.mxu0 0.0
    %298 = vmatpush.xpose.msra.mxu0 0.0
    %299 = vmatpush.xpose.msra.mxu0 0.0
    %300 = vmatpush.xpose.msra.mxu0 0.0
    %301 = vmatpush.xpose.msra.mxu0 0.0
    %302 = vmatpush.xpose.msra.mxu0 0.0
    %303 = vmatpush.xpose.msra.mxu0 0.0
    %304 = vmatpush.xpose.msra.mxu0 0.0
    %305 = vmatpush.xpose.msra.mxu0 0.0
    %306 = vmatpush.xpose.msra.mxu0 %v289
    %307 = vmatmul.f32.gmra.mxu0 %v287
    %v308 = vpop.f32.mrf.mxu0
    %v309 = vadd.f32 0.0, %v308
    %310 = vdwg.mxu0
    %v311 = vmul.f32 %v281, 0.17677669
    %v312 = vmul.f32 %v309, 0.17677669
    %v313 = vadd.f32 %v311, %v175
    %v314 = vadd.f32 %v312, %v176
    %v315 = vsel %vm119, %v313, -inf
    %316 = vmax.xlane.f32.xlu0 %v315
    %v317 = vpop.xlane.xlu0 %316
    %v318 = vsel %vm119, %v314, -inf
    %319 = vmax.xlane.f32.xlu0 %v318
    %v320 = vpop.xlane.xlu0 %319
    %v321 = vsub.f32 %v313, %v317
    %v322 = vsub.f32 %v314, %v320
    %v323 = vmul.f32 %v321, 1.442695
    %v324 = vpow.pop %v323
    %v325 = vmul.f32 %v322, 1.442695
    %v326 = vpow.pop %v325
    %v327 = vsel %vm119, %v324, 0.0
    %328 = vadd.xlane.f32.xlu0 %v327
    %v329 = vpop.xlane.xlu0 %328
    %v330 = vsel %vm119, %v326, 0.0
    %331 = vadd.xlane.f32.xlu0 %v330
    %v332 = vpop.xlane.xlu0 %331
    %v333 = vrcp.pop %v329
    %v334 = vrcp.pop %v332
    %v335 = vmul.f32 %v324, %v333
    %v336 = vmul.f32 %v326, %v334
    %337 = vrot.lane.b32.xlu0 %v108, 56
    %v338 = vpop.permute.xlu0 %337
    %v341 = vsel %vm119, %v335, 0
    %343 = vmatpush.msra.mxu0 0.0
    %344 = vmatpush.msra.mxu0 0.0
    %345 = vmatpush.msra.mxu0 0.0
    %346 = vmatpush.msra.mxu0 0.0
    %347 = vmatpush.msra.mxu0 0.0
    %348 = vmatpush.msra.mxu0 0.0
    %349 = vmatpush.msra.mxu0 0.0
    %350 = vmatpush.msra.mxu0 0.0
    %351 = vmatpush.msra.mxu0 0.0
    %352 = vmatpush.msra.mxu0 0.0
    %353 = vmatpush.msra.mxu0 0.0
    %354 = vmatpush.msra.mxu0 0.0
    %355 = vmatpush.msra.mxu0 0.0
    %356 = vmatpush.msra.mxu0 0.0
    %357 = vmatpush.msra.mxu0 0.0
    %358 = vmatpush.msra.mxu0 %v338
    %359 = vmatmul.f32.gmra.mxu0 %v341
    %v360 = vpop.f32.mrf.mxu0
    %v361 = vadd.f32 0.0, %v360
    %362 = vdwg.mxu0
    %363 = vrot.lane.b32.xlu0 %v111, 56
    %v364 = vpop.permute.xlu0 %363
    %v367 = vsel %vm119, %v336, 0
    %369 = vmatpush.msra.mxu0 0.0
    %370 = vmatpush.msra.mxu0 0.0
    %371 = vmatpush.msra.mxu0 0.0
    %372 = vmatpush.msra.mxu0 0.0
    %373 = vmatpush.msra.mxu0 0.0
    %374 = vmatpush.msra.mxu0 0.0
    %375 = vmatpush.msra.mxu0 0.0
    %376 = vmatpush.msra.mxu0 0.0
    %377 = vmatpush.msra.mxu0 0.0
    %378 = vmatpush.msra.mxu0 0.0
    %379 = vmatpush.msra.mxu0 0.0
    %380 = vmatpush.msra.mxu0 0.0
    %381 = vmatpush.msra.mxu0 0.0
    %382 = vmatpush.msra.mxu0 0.0
    %383 = vmatpush.msra.mxu0 0.0
    %384 = vmatpush.msra.mxu0 %v364
    %385 = vmatmul.f32.gmra.mxu0 %v367
    %v386 = vpop.f32.mrf.mxu0
    %v387 = vadd.f32 0.0, %v386
    %388 = vdwg.mxu0
    %390 = vrot.lane.b32.xlu0 %v68, 32
    %v391 = vpop.permute.xlu0 %390
    %v394 = vsel %vm119, %v361, 0
    %v397 = vsel %vm119, %v387, 0
    %399 = vmatpush.msra.mxu0 0.0
    %400 = vmatpush.msra.mxu0 0.0
    %401 = vmatpush.msra.mxu0 0.0
    %402 = vmatpush.msra.mxu0 0.0
    %403 = vmatpush.msra.mxu0 0.0
    %404 = vmatpush.msra.mxu0 0.0
    %405 = vmatpush.msra.mxu0 0.0
    %406 = vmatpush.msra.mxu0 0.0
    %407 = vmatpush.msra.mxu0 0.0
    %408 = vmatpush.msra.mxu0 0.0
    %409 = vmatpush.msra.mxu0 0.0
    %410 = vmatpush.msra.mxu0 0.0
    %411 = vmatpush.msra.mxu0 0.0
    %412 = vmatpush.msra.mxu0 0.0
    %413 = vmatpush.msra.mxu0 0.0
    %414 = vmatpush.msra.mxu0 %v391
    %415 = vmatmul.f32.gmra.mxu0 %v394
    %v416 = vpop.f32.mrf.mxu0
    %v417 = vadd.f32 0.0, %v416
    %418 = vmatmul.f32.gmra.mxu0 %v397
    %v419 = vpop.f32.mrf.mxu0
    %v420 = vadd.f32 0.0, %v419
    %421 = vdwg.mxu0
    %423 = vrot.lane.b32.xlu0 %v67, 32
    %v424 = vpop.permute.xlu0 %423
    %v427 = vsel %vm119, %v227, 0
    %v430 = vsel %vm119, %v253, 0
    %432 = vmatpush.msra.mxu0 0.0
    %433 = vmatpush.msra.mxu0 0.0
    %434 = vmatpush.msra.mxu0 0.0
    %435 = vmatpush.msra.mxu0 0.0
    %436 = vmatpush.msra.mxu0 0.0
    %437 = vmatpush.msra.mxu0 0.0
    %438 = vmatpush.msra.mxu0 0.0
    %439 = vmatpush.msra.mxu0 0.0
    %440 = vmatpush.msra.mxu0 0.0
    %441 = vmatpush.msra.mxu0 0.0
    %442 = vmatpush.msra.mxu0 0.0
    %443 = vmatpush.msra.mxu0 0.0
    %444 = vmatpush.msra.mxu0 0.0
    %445 = vmatpush.msra.mxu0 0.0
    %446 = vmatpush.msra.mxu0 0.0
    %447 = vmatpush.msra.mxu0 %v424
    %448 = vmatmul.f32.gmra.mxu0 %v427
    %v449 = vpop.f32.mrf.mxu0
    %v450 = vadd.f32 %v417, %v449
    %451 = vmatmul.f32.gmra.mxu0 %v430
    %v452 = vpop.f32.mrf.mxu0
    %v453 = vadd.f32 %v420, %v452
    %454 = vdwg.mxu0
    %455 = vrot.lane.b32.xlu0 %v102, 112
    %v456 = vpop.permute.xlu0 %455
    %457 = vrot.lane.b32.xlu0 %v108, 80
    %v458 = vpop.permute.xlu0 %457
    %v459 = vsel %vm119, %v456, 0
    %v461 = vsel %vm119, %v458, 0
    %463 = vmatpush.xpose.msra.mxu0 0.0
    %464 = vmatpush.xpose.msra.mxu0 0.0
    %465 = vmatpush.xpose.msra.mxu0 0.0
    %466 = vmatpush.xpose.msra.mxu0 0.0
    %467 = vmatpush.xpose.msra.mxu0 0.0
    %468 = vmatpush.xpose.msra.mxu0 0.0
    %469 = vmatpush.xpose.msra.mxu0 0.0
    %470 = vmatpush.xpose.msra.mxu0 0.0
    %471 = vmatpush.xpose.msra.mxu0 0.0
    %472 = vmatpush.xpose.msra.mxu0 0.0
    %473 = vmatpush.xpose.msra.mxu0 0.0
    %474 = vmatpush.xpose.msra.mxu0 0.0
    %475 = vmatpush.xpose.msra.mxu0 0.0
    %476 = vmatpush.xpose.msra.mxu0 0.0
    %477 = vmatpush.xpose.msra.mxu0 0.0
    %478 = vmatpush.xpose.msra.mxu0 %v461
    %479 = vmatmul.f32.gmra.mxu0 %v459
    %v480 = vpop.f32.mrf.mxu0
    %v481 = vadd.f32 0.0, %v480
    %482 = vdwg.mxu0
    %483 = vrot.lane.b32.xlu0 %v105, 112
    %v484 = vpop.permute.xlu0 %483
    %485 = vrot.lane.b32.xlu0 %v111, 80
    %v486 = vpop.permute.xlu0 %485
    %v487 = vsel %vm119, %v484, 0
    %v489 = vsel %vm119, %v486, 0
    %491 = vmatpush.xpose.msra.mxu0 0.0
    %492 = vmatpush.xpose.msra.mxu0 0.0
    %493 = vmatpush.xpose.msra.mxu0 0.0
    %494 = vmatpush.xpose.msra.mxu0 0.0
    %495 = vmatpush.xpose.msra.mxu0 0.0
    %496 = vmatpush.xpose.msra.mxu0 0.0
    %497 = vmatpush.xpose.msra.mxu0 0.0
    %498 = vmatpush.xpose.msra.mxu0 0.0
    %499 = vmatpush.xpose.msra.mxu0 0.0
    %500 = vmatpush.xpose.msra.mxu0 0.0
    %501 = vmatpush.xpose.msra.mxu0 0.0
    %502 = vmatpush.xpose.msra.mxu0 0.0
    %503 = vmatpush.xpose.msra.mxu0 0.0
    %504 = vmatpush.xpose.msra.mxu0 0.0
    %505 = vmatpush.xpose.msra.mxu0 0.0
    %506 = vmatpush.xpose.msra.mxu0 %v489
    %507 = vmatmul.f32.gmra.mxu0 %v487
    %v508 = vpop.f32.mrf.mxu0
    %v509 = vadd.f32 0.0, %v508
    %510 = vdwg.mxu0
    %v511 = vmul.f32 %v481, 0.17677669
    %v512 = vmul.f32 %v509, 0.17677669
    %v513 = vadd.f32 %v511, %v175
    %v514 = vadd.f32 %v512, %v176
    %v515 = vsel %vm119, %v513, -inf
    %516 = vmax.xlane.f32.xlu0 %v515
    %v517 = vpop.xlane.xlu0 %516
    %v518 = vsel %vm119, %v514, -inf
    %519 = vmax.xlane.f32.xlu0 %v518
    %v520 = vpop.xlane.xlu0 %519
    %v521 = vsub.f32 %v513, %v517
    %v522 = vsub.f32 %v514, %v520
    %v523 = vmul.f32 %v521, 1.442695
    %v524 = vpow.pop %v523
    %v525 = vmul.f32 %v522, 1.442695
    %v526 = vpow.pop %v525
    %v527 = vsel %vm119, %v524, 0.0
    %528 = vadd.xlane.f32.xlu0 %v527
    %v529 = vpop.xlane.xlu0 %528
    %v530 = vsel %vm119, %v526, 0.0
    %531 = vadd.xlane.f32.xlu0 %v530
    %v532 = vpop.xlane.xlu0 %531
    %v533 = vrcp.pop %v529
    %v534 = vrcp.pop %v532
    %v535 = vmul.f32 %v524, %v533
    %v536 = vmul.f32 %v526, %v534
    %537 = vrot.lane.b32.xlu0 %v108, 48
    %v538 = vpop.permute.xlu0 %537
    %v541 = vsel %vm119, %v535, 0
    %543 = vmatpush.msra.mxu0 0.0
    %544 = vmatpush.msra.mxu0 0.0
    %545 = vmatpush.msra.mxu0 0.0
    %546 = vmatpush.msra.mxu0 0.0
    %547 = vmatpush.msra.mxu0 0.0
    %548 = vmatpush.msra.mxu0 0.0
    %549 = vmatpush.msra.mxu0 0.0
    %550 = vmatpush.msra.mxu0 0.0
    %551 = vmatpush.msra.mxu0 0.0
    %552 = vmatpush.msra.mxu0 0.0
    %553 = vmatpush.msra.mxu0 0.0
    %554 = vmatpush.msra.mxu0 0.0
    %555 = vmatpush.msra.mxu0 0.0
    %556 = vmatpush.msra.mxu0 0.0
    %557 = vmatpush.msra.mxu0 0.0
    %558 = vmatpush.msra.mxu0 %v538
    %559 = vmatmul.f32.gmra.mxu0 %v541
    %v560 = vpop.f32.mrf.mxu0
    %v561 = vadd.f32 0.0, %v560
    %562 = vdwg.mxu0
    %563 = vrot.lane.b32.xlu0 %v111, 48
    %v564 = vpop.permute.xlu0 %563
    %v567 = vsel %vm119, %v536, 0
    %569 = vmatpush.msra.mxu0 0.0
    %570 = vmatpush.msra.mxu0 0.0
    %571 = vmatpush.msra.mxu0 0.0
    %572 = vmatpush.msra.mxu0 0.0
    %573 = vmatpush.msra.mxu0 0.0
    %574 = vmatpush.msra.mxu0 0.0
    %575 = vmatpush.msra.mxu0 0.0
    %576 = vmatpush.msra.mxu0 0.0
    %577 = vmatpush.msra.mxu0 0.0
    %578 = vmatpush.msra.mxu0 0.0
    %579 = vmatpush.msra.mxu0 0.0
    %580 = vmatpush.msra.mxu0 0.0
    %581 = vmatpush.msra.mxu0 0.0
    %582 = vmatpush.msra.mxu0 0.0
    %583 = vmatpush.msra.mxu0 0.0
    %584 = vmatpush.msra.mxu0 %v564
    %585 = vmatmul.f32.gmra.mxu0 %v567
    %v586 = vpop.f32.mrf.mxu0
    %v587 = vadd.f32 0.0, %v586
    %588 = vdwg.mxu0
    %590 = vrot.lane.b32.xlu0 %v69, 32
    %v591 = vpop.permute.xlu0 %590
    %v594 = vsel %vm119, %v561, 0
    %v597 = vsel %vm119, %v587, 0
    %599 = vmatpush.msra.mxu0 0.0
    %600 = vmatpush.msra.mxu0 0.0
    %601 = vmatpush.msra.mxu0 0.0
    %602 = vmatpush.msra.mxu0 0.0
    %603 = vmatpush.msra.mxu0 0.0
    %604 = vmatpush.msra.mxu0 0.0
    %605 = vmatpush.msra.mxu0 0.0
    %606 = vmatpush.msra.mxu0 0.0
    %607 = vmatpush.msra.mxu0 0.0
    %608 = vmatpush.msra.mxu0 0.0
    %609 = vmatpush.msra.mxu0 0.0
    %610 = vmatpush.msra.mxu0 0.0
    %611 = vmatpush.msra.mxu0 0.0
    %612 = vmatpush.msra.mxu0 0.0
    %613 = vmatpush.msra.mxu0 0.0
    %614 = vmatpush.msra.mxu0 %v591
    %615 = vmatmul.f32.gmra.mxu0 %v594
    %v616 = vpop.f32.mrf.mxu0
    %v617 = vadd.f32 0.0, %v616
    %618 = vmatmul.f32.gmra.mxu0 %v597
    %v619 = vpop.f32.mrf.mxu0
    %v620 = vadd.f32 0.0, %v619
    %621 = vdwg.mxu0
    %v622 = vadd.f32 %v450, %v617
    %v623 = vadd.f32 %v453, %v620
    %624 = vrot.lane.b32.xlu0 %v102, 104
    %v625 = vpop.permute.xlu0 %624
    %626 = vrot.lane.b32.xlu0 %v108, 72
    %v627 = vpop.permute.xlu0 %626
    %v628 = vsel %vm119, %v625, 0
    %v630 = vsel %vm119, %v627, 0
    %632 = vmatpush.xpose.msra.mxu0 0.0
    %633 = vmatpush.xpose.msra.mxu0 0.0
    %634 = vmatpush.xpose.msra.mxu0 0.0
    %635 = vmatpush.xpose.msra.mxu0 0.0
    %636 = vmatpush.xpose.msra.mxu0 0.0
    %637 = vmatpush.xpose.msra.mxu0 0.0
    %638 = vmatpush.xpose.msra.mxu0 0.0
    %639 = vmatpush.xpose.msra.mxu0 0.0
    %640 = vmatpush.xpose.msra.mxu0 0.0
    %641 = vmatpush.xpose.msra.mxu0 0.0
    %642 = vmatpush.xpose.msra.mxu0 0.0
    %643 = vmatpush.xpose.msra.mxu0 0.0
    %644 = vmatpush.xpose.msra.mxu0 0.0
    %645 = vmatpush.xpose.msra.mxu0 0.0
    %646 = vmatpush.xpose.msra.mxu0 0.0
    %647 = vmatpush.xpose.msra.mxu0 %v630
    %648 = vmatmul.f32.gmra.mxu0 %v628
    %v649 = vpop.f32.mrf.mxu0
    %v650 = vadd.f32 0.0, %v649
    %651 = vdwg.mxu0
    %652 = vrot.lane.b32.xlu0 %v105, 104
    %v653 = vpop.permute.xlu0 %652
    %654 = vrot.lane.b32.xlu0 %v111, 72
    %v655 = vpop.permute.xlu0 %654
    %v656 = vsel %vm119, %v653, 0
    %v658 = vsel %vm119, %v655, 0
    %660 = vmatpush.xpose.msra.mxu0 0.0
    %661 = vmatpush.xpose.msra.mxu0 0.0
    %662 = vmatpush.xpose.msra.mxu0 0.0
    %663 = vmatpush.xpose.msra.mxu0 0.0
    %664 = vmatpush.xpose.msra.mxu0 0.0
    %665 = vmatpush.xpose.msra.mxu0 0.0
    %666 = vmatpush.xpose.msra.mxu0 0.0
    %667 = vmatpush.xpose.msra.mxu0 0.0
    %668 = vmatpush.xpose.msra.mxu0 0.0
    %669 = vmatpush.xpose.msra.mxu0 0.0
    %670 = vmatpush.xpose.msra.mxu0 0.0
    %671 = vmatpush.xpose.msra.mxu0 0.0
    %672 = vmatpush.xpose.msra.mxu0 0.0
    %673 = vmatpush.xpose.msra.mxu0 0.0
    %674 = vmatpush.xpose.msra.mxu0 0.0
    %675 = vmatpush.xpose.msra.mxu0 %v658
    %676 = vmatmul.f32.gmra.mxu0 %v656
    %v677 = vpop.f32.mrf.mxu0
    %v678 = vadd.f32 0.0, %v677
    %679 = vdwg.mxu0
    %v680 = vmul.f32 %v650, 0.17677669
    %v681 = vmul.f32 %v678, 0.17677669
    %v682 = vadd.f32 %v680, %v175
    %v683 = vadd.f32 %v681, %v176
    %v684 = vsel %vm119, %v682, -inf
    %685 = vmax.xlane.f32.xlu0 %v684
    %v686 = vpop.xlane.xlu0 %685
    %v687 = vsel %vm119, %v683, -inf
    %688 = vmax.xlane.f32.xlu0 %v687
    %v689 = vpop.xlane.xlu0 %688
    %v690 = vsub.f32 %v682, %v686
    %v691 = vsub.f32 %v683, %v689
    %v692 = vmul.f32 %v690, 1.442695
    %v693 = vpow.pop %v692
    %v694 = vmul.f32 %v691, 1.442695
    %v695 = vpow.pop %v694
    %v696 = vsel %vm119, %v693, 0.0
    %697 = vadd.xlane.f32.xlu0 %v696
    %v698 = vpop.xlane.xlu0 %697
    %v699 = vsel %vm119, %v695, 0.0
    %700 = vadd.xlane.f32.xlu0 %v699
    %v701 = vpop.xlane.xlu0 %700
    %v702 = vrcp.pop %v698
    %v703 = vrcp.pop %v701
    %v704 = vmul.f32 %v693, %v702
    %v705 = vmul.f32 %v695, %v703
    %706 = vrot.lane.b32.xlu0 %v108, 40
    %v707 = vpop.permute.xlu0 %706
    %v710 = vsel %vm119, %v704, 0
    %712 = vmatpush.msra.mxu0 0.0
    %713 = vmatpush.msra.mxu0 0.0
    %714 = vmatpush.msra.mxu0 0.0
    %715 = vmatpush.msra.mxu0 0.0
    %716 = vmatpush.msra.mxu0 0.0
    %717 = vmatpush.msra.mxu0 0.0
    %718 = vmatpush.msra.mxu0 0.0
    %719 = vmatpush.msra.mxu0 0.0
    %720 = vmatpush.msra.mxu0 0.0
    %721 = vmatpush.msra.mxu0 0.0
    %722 = vmatpush.msra.mxu0 0.0
    %723 = vmatpush.msra.mxu0 0.0
    %724 = vmatpush.msra.mxu0 0.0
    %725 = vmatpush.msra.mxu0 0.0
    %726 = vmatpush.msra.mxu0 0.0
    %727 = vmatpush.msra.mxu0 %v707
    %728 = vmatmul.f32.gmra.mxu0 %v710
    %v729 = vpop.f32.mrf.mxu0
    %v730 = vadd.f32 0.0, %v729
    %731 = vdwg.mxu0
    %732 = vrot.lane.b32.xlu0 %v111, 40
    %v733 = vpop.permute.xlu0 %732
    %v736 = vsel %vm119, %v705, 0
    %738 = vmatpush.msra.mxu0 0.0
    %739 = vmatpush.msra.mxu0 0.0
    %740 = vmatpush.msra.mxu0 0.0
    %741 = vmatpush.msra.mxu0 0.0
    %742 = vmatpush.msra.mxu0 0.0
    %743 = vmatpush.msra.mxu0 0.0
    %744 = vmatpush.msra.mxu0 0.0
    %745 = vmatpush.msra.mxu0 0.0
    %746 = vmatpush.msra.mxu0 0.0
    %747 = vmatpush.msra.mxu0 0.0
    %748 = vmatpush.msra.mxu0 0.0
    %749 = vmatpush.msra.mxu0 0.0
    %750 = vmatpush.msra.mxu0 0.0
    %751 = vmatpush.msra.mxu0 0.0
    %752 = vmatpush.msra.mxu0 0.0
    %753 = vmatpush.msra.mxu0 %v733
    %754 = vmatmul.f32.gmra.mxu0 %v736
    %v755 = vpop.f32.mrf.mxu0
    %v756 = vadd.f32 0.0, %v755
    %757 = vdwg.mxu0
    %759 = vrot.lane.b32.xlu0 %v70, 32
    %v760 = vpop.permute.xlu0 %759
    %v763 = vsel %vm119, %v730, 0
    %v766 = vsel %vm119, %v756, 0
    %768 = vmatpush.msra.mxu0 0.0
    %769 = vmatpush.msra.mxu0 0.0
    %770 = vmatpush.msra.mxu0 0.0
    %771 = vmatpush.msra.mxu0 0.0
    %772 = vmatpush.msra.mxu0 0.0
    %773 = vmatpush.msra.mxu0 0.0
    %774 = vmatpush.msra.mxu0 0.0
    %775 = vmatpush.msra.mxu0 0.0
    %776 = vmatpush.msra.mxu0 0.0
    %777 = vmatpush.msra.mxu0 0.0
    %778 = vmatpush.msra.mxu0 0.0
    %779 = vmatpush.msra.mxu0 0.0
    %780 = vmatpush.msra.mxu0 0.0
    %781 = vmatpush.msra.mxu0 0.0
    %782 = vmatpush.msra.mxu0 0.0
    %783 = vmatpush.msra.mxu0 %v760
    %784 = vmatmul.f32.gmra.mxu0 %v763
    %v785 = vpop.f32.mrf.mxu0
    %v786 = vadd.f32 0.0, %v785
    %787 = vmatmul.f32.gmra.mxu0 %v766
    %v788 = vpop.f32.mrf.mxu0
    %v789 = vadd.f32 0.0, %v788
    %790 = vdwg.mxu0
    %v791 = vadd.f32 %v622, %v786
    %v792 = vadd.f32 %v623, %v789
    %793 = vst.msk [vmem:[#allocation9] sm:$0xff] %vm119, %v201
    %794 = vst.msk [vmem:[#allocation9 + $0x8] sm:$0xff] %vm119, %v335
    %795 = vst.msk [vmem:[#allocation9 + $0x10] sm:$0xff] %vm119, %v535
    %796 = vst.msk [vmem:[#allocation9 + $0x18] sm:$0xff] %vm119, %v704
    %797 = vst.msk [vmem:[#allocation9 + $0x20] sm:$0xff] %vm119, %v202
    %798 = vst.msk [vmem:[#allocation9 + $0x28] sm:$0xff] %vm119, %v336
    %799 = vst.msk [vmem:[#allocation9 + $0x30] sm:$0xff] %vm119, %v536
    %800 = vst.msk [vmem:[#allocation9 + $0x38] sm:$0xff] %vm119, %v705
    %801 = vst.msk [vmem:[#allocation8] sm:$0xff] %vm71, %v791
    %802 = vst.msk [vmem:[#allocation8 + $0x8] sm:$0xff] %vm71, %v792
    // Predicated region
    $region26: #{tpu_custom_call.1} parent=1 // pred_check
      _
    $region27: #{tpu_custom_call.1} parent=1 // pred_check_branch
      %804 = sbr.rel (0) target = $region29
    $region28: #{tpu_custom_call.1} parent=1 // pred_region
      %806 = vsyncadd [#allocation4], 0
      %s807 = sshll.u32 [#allocation8], 4
      %s808 = int_to_ptr.vmem [resolvable:$true] %s807
      %s809 = sshll.u32 %s3, 4
      %s810 = int_to_ptr.hbm [resolvable:$true] %s809
      %815 = dma.vmem_to_hbm [thread:$0]  %s808, 256, %s810, [#allocation4], 128, 128, 8
    $region29: #{tpu_custom_call.1} parent=1 // pred_fallthru
      _
    // Predicated region
    $region30: #{tpu_custom_call.1} parent=1 // pred_check
      _
    $region31: #{tpu_custom_call.1} parent=1 // pred_check_branch
      %817 = sbr.rel (0) target = $region33
    $region32: #{tpu_custom_call.1} parent=1 // pred_region
      %819 = vsyncadd [#allocation10], 0
      %s820 = sshll.u32 [#allocation9], 4
      %s821 = int_to_ptr.vmem [resolvable:$true] %s820
      %s822 = sshll.u32 %s4, 4
      %s823 = int_to_ptr.hbm [resolvable:$true] %s822
      %828 = dma.vmem_to_hbm [thread:$0]  %s821, 1024, %s823, [#allocation10], 128, 128, 8
    $region33: #{tpu_custom_call.1} parent=1 // pred_fallthru
      _
    // Predicated region
    $region34: #{tpu_custom_call.1} parent=1 // pred_check
      _
    $region35: #{tpu_custom_call.1} parent=1 // pred_check_branch
      %830 = sbr.rel (0) target = $region37
    $region36: #{tpu_custom_call.1} parent=1 // pred_region
      %832 = dma.done [#allocation4], 256
    $region37: #{tpu_custom_call.1} parent=1 // pred_fallthru
      _
    // Predicated region
    $region38: #{tpu_custom_call.1} parent=1 // pred_check
      _
    $region39: #{tpu_custom_call.1} parent=1 // pred_check_branch
      %834 = sbr.rel (0) target = $region41
    $region40: #{tpu_custom_call.1} parent=1 // pred_region
      %836 = dma.done [#allocation10], 1024
    $region41: #{tpu_custom_call.1} parent=1 // pred_fallthru
      _
    %837 = vsyncpa [#allocation3], 1
    %838 = vsyncpa [#allocation6], 1
    %839 = vsyncpa [#allocation4], 1
    %840 = vsyncpa [#allocation10], 1

</llo_original>
